<compile_context>
chip_gen: v7x
topology: tpu7x:2x2x1
jax: 0.10.0
libtpu: 0.0.40
codegen_flags: <defaults>
</compile_context>

<pallas_src>
import jax
import jax.numpy as jnp
from jax.experimental import pallas as pl
from jax.experimental.pallas import tpu as pltpu


def _round_up(n, m):
    return ((n + m - 1) // m) * m


def _batch_dim_semantics():
    """CORE_PARALLEL on multi-TC chips (v7x); plain "parallel" elsewhere."""
    try:
        kind = jax.devices()[0].device_kind.lower()
    except Exception:
        kind = ""
    if "v7" in kind:
        return (pltpu.CORE_PARALLEL,)
    return ("parallel",)


def _batch_net_kernel(x_ref, w1_ref, b1_ref, w2_ref, b2_ref, o_ref):
    # x arrives f32 (narrow HBM read); cast to bf16 in VMEM for the MXU.
    x = x_ref[...].astype(jnp.bfloat16)
    # Layer 1: bf16 operands, f32 accumulation; bias + ReLU in f32.
    h = jnp.dot(x, w1_ref[...], preferred_element_type=jnp.float32)
    h = jnp.maximum(h + b1_ref[...], 0.0)          # b1 is (1, H): broadcasts
    # Layer 2: re-quantize h to bf16, f32 accumulation, f32 bias add.
    y = jnp.dot(h.astype(jnp.bfloat16), w2_ref[...],
                preferred_element_type=jnp.float32)
    o_ref[...] = (y + b2_ref[...]).astype(o_ref.dtype)


def prepare_batch_net_params(w1_t, b1, w2_t, b2):
    """One-time cast/reshape of params (done outside the per-call forward).

    w1_t: [in_dim, H]; b1: [H]; w2_t: [H, out_dim]; b2: [out_dim].
    Weights -> bf16 MXU operands, biases -> (1, N) f32 rows.
    """
    return (
        w1_t.astype(jnp.bfloat16),
        b1.astype(jnp.float32).reshape(1, -1),
        w2_t.astype(jnp.bfloat16),
        b2.astype(jnp.float32).reshape(1, -1),
    )


def batch_net_forward(x, params, *, batch_tile=1024):
    """x: [B, in_dim] (f32). params from prepare_batch_net_params."""
    w1_p, b1_p, w2_p, b2_p = params
    B, in_dim = x.shape
    H = w1_p.shape[1]
    out_dim = w2_p.shape[1]

    # Batch tiling: a single tile for small B (gridless path), otherwise
    # fixed-size tiles with zero-padded tail rows (sliced off below).
    if B <= batch_tile:
        TB = _round_up(B, 8)          # f32 x block -> (8, ...) sublane packing
    else:
        TB = batch_tile
    Bp = _round_up(B, TB)
    num_tiles = Bp // TB

    x_p = x if Bp == B else jnp.pad(x, ((0, Bp - B), (0, 0)))

    # Output at its true width (out_dim), f32 — no lane padding, no slice pass.
    out_shape = jax.ShapeDtypeStruct((Bp, out_dim), jnp.float32)

    if num_tiles == 1:
        # Single block: no grid, no pipelining bookkeeping — whole arrays in VMEM.
        out_p = pl.pallas_call(
            _batch_net_kernel,
            out_shape=out_shape,
            in_specs=[pl.BlockSpec(memory_space=pltpu.MemorySpace.VMEM)] * 5,
            out_specs=pl.BlockSpec(memory_space=pltpu.MemorySpace.VMEM),
        )(x_p, w1_p, b1_p, w2_p, b2_p)
    else:
        # Batch-tiled: x / out stream through double-buffered VMEM tiles while
        # the (tiny) weights and biases stay resident via constant index_maps.
        out_p = pl.pallas_call(
            _batch_net_kernel,
            out_shape=out_shape,
            grid_spec=pltpu.PrefetchScalarGridSpec(
                num_scalar_prefetch=0,
                grid=(num_tiles,),
                in_specs=[
                    pl.BlockSpec((TB, in_dim), lambda i: (i, 0)),   # x: streamed
                    pl.BlockSpec((in_dim, H), lambda i: (0, 0)),    # W1: resident
                    pl.BlockSpec((1, H), lambda i: (0, 0)),         # b1: resident
                    pl.BlockSpec((H, out_dim), lambda i: (0, 0)),   # W2: resident
                    pl.BlockSpec((1, out_dim), lambda i: (0, 0)),   # b2: resident
                ],
                out_specs=pl.BlockSpec((TB, out_dim), lambda i: (i, 0)),
            ),
            compiler_params=pltpu.CompilerParams(
                # Independent batch tiles; CORE_PARALLEL on v7x so both
                # TensorCores stream tiles, "parallel" on single-TC chips.
                dimension_semantics=_batch_dim_semantics(),
            ),
        )(x_p, w1_p, b1_p, w2_p, b2_p)

    return out_p if Bp == B else out_p[:B]


def init_batch_net_params(key, in_dim, n_hidden_1, out_dim):
    """Deterministic init mimicking nn.Linear's U(-1/sqrt(fan_in), 1/sqrt(fan_in))."""
    k1, k2, k3, k4 = jax.random.split(key, 4)
    bound1 = 1.0 / (in_dim ** 0.5)
    bound2 = 1.0 / (n_hidden_1 ** 0.5)
    # PyTorch stores weight as [out, in]; we keep the transposed [in, out] form.
    w1_t = jax.random.uniform(k1, (in_dim, n_hidden_1), jnp.float32, -bound1, bound1)
    b1 = jax.random.uniform(k2, (n_hidden_1,), jnp.float32, -bound1, bound1)
    w2_t = jax.random.uniform(k3, (n_hidden_1, out_dim), jnp.float32, -bound2, bound2)
    b2 = jax.random.uniform(k4, (out_dim,), jnp.float32, -bound2, bound2)
    return w1_t, b1, w2_t, b2


if __name__ == "__main__":
    # Shapes consistent with Batch_Net(in_dim, n_hidden_1, out_dim).
    in_dim, n_hidden_1, out_dim = 32, 64, 16

    key = jax.random.PRNGKey(0)
    k_x1, k_x2, k_p = jax.random.split(key, 3)
    w1_t, b1, w2_t, b2 = init_batch_net_params(k_p, in_dim, n_hidden_1, out_dim)
    # One-time param preparation (cast/reshape), reused across forwards.
    params = prepare_batch_net_params(w1_t, b1, w2_t, b2)

    def ref_f32(xa):
        # Pure-f32 reference of the PyTorch module semantics.
        return jnp.maximum(xa @ w1_t + b1, 0.0) @ w2_t + b2

    def ref_bf16(xa):
        # Reference with the same bf16-operand / f32-accumulate scheme as the kernel.
        h = jnp.dot(xa.astype(jnp.bfloat16), w1_t.astype(jnp.bfloat16),
                    preferred_element_type=jnp.float32)
        h = jnp.maximum(h + b1, 0.0)
        y = jnp.dot(h.astype(jnp.bfloat16), w2_t.astype(jnp.bfloat16),
                    preferred_element_type=jnp.float32)
        return y + b2

    # Small batch -> single-block gridless path.
    x_small = jax.random.normal(k_x1, (8, in_dim), dtype=jnp.float32)
    out_small = jax.block_until_ready(batch_net_forward(x_small, params))
    assert out_small.shape == (8, out_dim)
    assert jnp.allclose(out_small, ref_bf16(x_small), atol=1e-3, rtol=1e-3)
    assert jnp.allclose(out_small, ref_f32(x_small), atol=1e-1, rtol=1e-1)

    # Larger batch -> batch-tiled, double-buffered, core-parallel path.
    x_big = jax.random.normal(k_x2, (384, in_dim), dtype=jnp.float32)
    out_big = jax.block_until_ready(
        batch_net_forward(x_big, params, batch_tile=128))
    assert out_big.shape == (384, out_dim)
    assert jnp.allclose(out_big, ref_bf16(x_big), atol=1e-3, rtol=1e-3)
    assert jnp.allclose(out_big, ref_f32(x_big), atol=1e-1, rtol=1e-1)

    print("KERNEL_OK")
</pallas_src>

<mosaic_0001>
module attributes {stable_mosaic.version = 11 : i64} {
  func.func @_batch_net_kernel(%arg0: memref<8x32xf32, #tpu.memory_space<vmem>>, %arg1: memref<32x64xbf16, #tpu.memory_space<vmem>>, %arg2: memref<1x64xf32, #tpu.memory_space<vmem>>, %arg3: memref<64x16xbf16, #tpu.memory_space<vmem>>, %arg4: memref<1x16xf32, #tpu.memory_space<vmem>>, %arg5: memref<8x16xf32, #tpu.memory_space<vmem>>) attributes {dimension_semantics = [], scalar_prefetch = 0 : i64, scratch_operands = 0 : i64, tpu.core_type = #tpu.core_type<tc>} {
    %c0 = arith.constant 0 : index
    %c0_0 = arith.constant 0 : index
    %0 = vector.load %arg0[%c0, %c0_0] : memref<8x32xf32, #tpu.memory_space<vmem>>, vector<8x32xf32>
    %1 = arith.truncf %0 : vector<8x32xf32> to vector<8x32xbf16>
    %c0_1 = arith.constant 0 : index
    %c0_2 = arith.constant 0 : index
    %2 = vector.load %arg1[%c0_1, %c0_2] : memref<32x64xbf16, #tpu.memory_space<vmem>>, vector<32x64xbf16>
    %cst = arith.constant dense<0.000000e+00> : vector<8x64xf32>
    %3 = tpu.matmul %1, %2, %cst {dimension_numbers = #tpu.dot_dimension_numbers<[1], [0], [0], [1], [0, 0, 1, 1], [], []>} : vector<8x32xbf16>, vector<32x64xbf16>, vector<8x64xf32> -> vector<8x64xf32>
    %c0_3 = arith.constant 0 : index
    %c0_4 = arith.constant 0 : index
    %4 = vector.load %arg2[%c0_3, %c0_4] : memref<1x64xf32, #tpu.memory_space<vmem>>, vector<1x64xf32>
    %5 = vector.broadcast %4 : vector<1x64xf32> to vector<8x64xf32>
    %6 = arith.addf %3, %5 : vector<8x64xf32>
    %cst_5 = arith.constant 0.000000e+00 : f32
    %7 = vector.broadcast %cst_5 : f32 to vector<8x64xf32>
    %8 = arith.maximumf %6, %7 : vector<8x64xf32>
    %9 = arith.truncf %8 : vector<8x64xf32> to vector<8x64xbf16>
    %c0_6 = arith.constant 0 : index
    %c0_7 = arith.constant 0 : index
    %10 = vector.load %arg3[%c0_6, %c0_7] : memref<64x16xbf16, #tpu.memory_space<vmem>>, vector<64x16xbf16>
    %cst_8 = arith.constant dense<0.000000e+00> : vector<8x16xf32>
    %11 = tpu.matmul %9, %10, %cst_8 {dimension_numbers = #tpu.dot_dimension_numbers<[1], [0], [0], [1], [0, 0, 1, 1], [], []>} : vector<8x64xbf16>, vector<64x16xbf16>, vector<8x16xf32> -> vector<8x16xf32>
    %c0_9 = arith.constant 0 : index
    %c0_10 = arith.constant 0 : index
    %12 = vector.load %arg4[%c0_9, %c0_10] : memref<1x16xf32, #tpu.memory_space<vmem>>, vector<1x16xf32>
    %13 = vector.broadcast %12 : vector<1x16xf32> to vector<8x16xf32>
    %14 = arith.addf %11, %13 : vector<8x16xf32>
    %c0_11 = arith.constant 0 : index
    %c0_12 = arith.constant 0 : index
    %15 = vector.load %arg5[%c0_11, %c0_12] : memref<8x16xf32, #tpu.memory_space<vmem>>, vector<8x16xf32>
    tpu.vector_store %arg5[%c0_11, %c0_12], %14 {strides = array<i32>} : memref<8x16xf32, #tpu.memory_space<vmem>>, vector<8x16xf32>,
    return
  }
}

</mosaic_0001>

<llo_original>
// kernel: tpu_custom_call.1
$region0: #{tpu_custom_call.1}
  #allocation0 [shape = 'u32[]', space=smem, size = 0x4, offset = 0x4, fixed_abs, tag = 'smem constant byte address 0x4 - core index']
  #allocation1 [shape = 'u32[144,128]{1,0:T(1,128)}', space=vmem, size = 0x12000, scoped, tag = 'internal scratch']
  %s0 = inlined_call_operand.vmem [shape: f32[8,32], index: 0, kind: input, shape index: {}]
  %s1 = inlined_call_operand.vmem [shape: bf16[32,64], index: 1, kind: input, shape index: {}]
  %s2 = inlined_call_operand.vmem [shape: f32[1,64], index: 2, kind: input, shape index: {}]
  %s3 = inlined_call_operand.vmem [shape: bf16[64,16], index: 3, kind: input, shape index: {}]
  %s4 = inlined_call_operand.vmem [shape: f32[1,16], index: 4, kind: input, shape index: {}]
  %s5 = inlined_call_operand.hbm [shape: f32[8,16], index: 5, kind: output, shape index: {}]
  %s6 = sld [smem:[#allocation0]]
  $region30: #{tpu_custom_call.1} parent=0
    _
  %s8 = ssub.s32 1, %s6
  %s9 = scalar_select 0, %s8, %s6
  $region1: #{tpu_custom_call.1} parent=0
    #allocation2 [shape = 'u8[4096]{0}', space=vmem, size = 0x1000, scoped, tag = 'output window, operand 0, single buffered']
    #allocation3 [shape = 's32[1]{0}', space=sflag, size = 0x4, scoped, tag = 'scoped memory for tpu_custom_call.1']
    %10 = vsyncpa [#allocation3], 0
    // Predicated region
    $region2: #{tpu_custom_call.1} parent=1 // pred_check
      _
    $region3: #{tpu_custom_call.1} parent=1 // pred_check_branch
      %12 = sbr.rel (0) target = $region5
    $region4: #{tpu_custom_call.1} parent=1 // pred_region
      _
    $region5: #{tpu_custom_call.1} parent=1 // pred_fallthru
      _
    // Predicated region
    $region6: #{tpu_custom_call.1} parent=1 // pred_check
      _
    $region7: #{tpu_custom_call.1} parent=1 // pred_check_branch
      %14 = sbr.rel (0) target = $region9
    $region8: #{tpu_custom_call.1} parent=1 // pred_region
      _
    $region9: #{tpu_custom_call.1} parent=1 // pred_fallthru
      _
    // Predicated region
    $region10: #{tpu_custom_call.1} parent=1 // pred_check
      _
    $region11: #{tpu_custom_call.1} parent=1 // pred_check_branch
      %16 = sbr.rel (0) target = $region13
    $region12: #{tpu_custom_call.1} parent=1 // pred_region
      _
    $region13: #{tpu_custom_call.1} parent=1 // pred_fallthru
      _
    // Predicated region
    $region14: #{tpu_custom_call.1} parent=1 // pred_check
      _
    $region15: #{tpu_custom_call.1} parent=1 // pred_check_branch
      %18 = sbr.rel (0) target = $region17
    $region16: #{tpu_custom_call.1} parent=1 // pred_region
      _
    $region17: #{tpu_custom_call.1} parent=1 // pred_fallthru
      _
    // Predicated region
    $region18: #{tpu_custom_call.1} parent=1 // pred_check
      _
    $region19: #{tpu_custom_call.1} parent=1 // pred_check_branch
      %20 = sbr.rel (0) target = $region21
    $region20: #{tpu_custom_call.1} parent=1 // pred_region
      _
    $region21: #{tpu_custom_call.1} parent=1 // pred_fallthru
      _
    %v22 = vld [vmem:[%s0] sm:$0xff]
    %v23 = vpack.c.bf16 %v22, %v22
    %v24 = vld [vmem:[%s1] sm:$0xf]
    %v25 = vld [vmem:[%s1 + $0x4] sm:$0xf]
    %v26 = vld [vmem:[%s1 + $0x8] sm:$0xf]
    %v27 = vld [vmem:[%s1 + $0xc] sm:$0xf]
    %v28 = vld [vmem:[%s2] sm:$0x1]
    %v30 = vlaneseq
    %v31 = vshrl.u32 %v30, 7
    %v32 = vsub.s32 0, %v31
    %v33 = vrot.slane %v28, %v32
    %v39 = vunpack.c.l.b16 %v24
    %v40 = vunpack.c.l.b16 %v25
    %v41 = vunpack.c.l.b16 %v26
    %v42 = vunpack.c.l.b16 %v27
    %v43 = vpack.c.b16 %v40, %v39
    %v44 = vpack.c.b16 %v42, %v41
    %vm47 = vcmask 261120
    %v49 = vsel %vm47, %v23, 0
    %51 = vmatprep.subr.bf16.mxu0 0
    %52 = vmatpush1.bf16.msra.mxu0 %v43
    %53 = vmatprep.subr.bf16.mxu0 0
    %54 = vmatpush1.bf16.msra.mxu0 %v44
    %55 = vmatprep.subr.bf16.mxu0 0
    %56 = vmatpush1.bf16.msra.mxu0 0
    %57 = vmatprep.subr.bf16.mxu0 0
    %58 = vmatpush1.bf16.msra.mxu0 0
    %59 = vmatprep.subr.bf16.mxu0 0
    %60 = vmatpush1.bf16.msra.mxu0 0
    %61 = vmatprep.subr.bf16.mxu0 0
    %62 = vmatpush1.bf16.msra.mxu0 0
    %63 = vmatprep.subr.bf16.mxu0 0
    %64 = vmatpush1.bf16.msra.mxu0 0
    %65 = vmatprep.subr.bf16.mxu0 0
    %66 = vmatpush1.bf16.msra.mxu0 0
    %67 = vmatprep.subr.bf16.mxu0 0
    %68 = vmatpush1.bf16.msra.mxu0 0
    %69 = vmatprep.subr.bf16.mxu0 0
    %70 = vmatpush1.bf16.msra.mxu0 0
    %71 = vmatprep.subr.bf16.mxu0 0
    %72 = vmatpush1.bf16.msra.mxu0 0
    %73 = vmatprep.subr.bf16.mxu0 0
    %74 = vmatpush1.bf16.msra.mxu0 0
    %75 = vmatprep.subr.bf16.mxu0 0
    %76 = vmatpush1.bf16.msra.mxu0 0
    %77 = vmatprep.subr.bf16.mxu0 0
    %78 = vmatpush1.bf16.msra.mxu0 0
    %79 = vmatprep.subr.bf16.mxu0 0
    %80 = vmatpush1.bf16.msra.mxu0 0
    %81 = vmatprep.subr.bf16.mxu0 0
    %82 = vmatpush1.bf16.msra.mxu0 0
    %83 = vmatprep.mubr.bf16.mxu0 0
    %84 = vmatmul.mubr.bf16.gmra.mrb[0].mxu0 %v49
    %v85 = vpop.f32.mrb[0].mxu0
    %v86 = vadd.f32 %v33, %v85
    %v87 = vpop.f32.mrb[0].mxu0
    %v88 = vpop.f32.mrb[0].mxu0
    %v89 = vpop.f32.mrb[0].mxu0
    %90 = vdwg.mxu0
    %v91 = vmax.f32 %v86, 0.0
    %v92 = vpack.c.bf16 %v91, %v91
    %v93 = vld [vmem:[%s3] sm:$0xf]
    %v94 = vld [vmem:[%s3 + $0x4] sm:$0xf]
    %v95 = vld [vmem:[%s3 + $0x8] sm:$0xf]
    %v96 = vld [vmem:[%s3 + $0xc] sm:$0xf]
    %v97 = vld [vmem:[%s3 + $0x10] sm:$0xf]
    %v98 = vld [vmem:[%s3 + $0x14] sm:$0xf]
    %v99 = vld [vmem:[%s3 + $0x18] sm:$0xf]
    %v100 = vld [vmem:[%s3 + $0x1c] sm:$0xf]
    %v101 = vld [vmem:[%s4] sm:$0x1]
    %v103 = vlaneseq
    %v104 = vshrl.u32 %v103, 7
    %v105 = vsub.s32 0, %v104
    %v106 = vrot.slane %v101, %v105
    %v116 = vunpack.c.l.b16 %v93
    %v117 = vunpack.c.l.b16 %v94
    %v118 = vunpack.c.l.b16 %v95
    %v119 = vunpack.c.l.b16 %v96
    %v120 = vunpack.c.l.b16 %v97
    %v121 = vunpack.c.l.b16 %v98
    %v122 = vunpack.c.l.b16 %v99
    %v123 = vunpack.c.l.b16 %v100
    %v124 = vpack.c.b16 %v117, %v116
    %v125 = vpack.c.b16 %v119, %v118
    %v126 = vpack.c.b16 %v121, %v120
    %v127 = vpack.c.b16 %v123, %v122
    %vm132 = vcmask 523264
    %v134 = vsel %vm132, %v92, 0
    %136 = vmatprep.subr.bf16.mxu0 0
    %137 = vmatpush1.bf16.msra.mxu0 %v124
    %138 = vmatprep.subr.bf16.mxu0 0
    %139 = vmatpush1.bf16.msra.mxu0 %v125
    %140 = vmatprep.subr.bf16.mxu0 0
    %141 = vmatpush1.bf16.msra.mxu0 %v126
    %142 = vmatprep.subr.bf16.mxu0 0
    %143 = vmatpush1.bf16.msra.mxu0 %v127
    %144 = vmatprep.subr.bf16.mxu0 0
    %145 = vmatpush1.bf16.msra.mxu0 0
    %146 = vmatprep.subr.bf16.mxu0 0
    %147 = vmatpush1.bf16.msra.mxu0 0
    %148 = vmatprep.subr.bf16.mxu0 0
    %149 = vmatpush1.bf16.msra.mxu0 0
    %150 = vmatprep.subr.bf16.mxu0 0
    %151 = vmatpush1.bf16.msra.mxu0 0
    %152 = vmatprep.subr.bf16.mxu0 0
    %153 = vmatpush1.bf16.msra.mxu0 0
    %154 = vmatprep.subr.bf16.mxu0 0
    %155 = vmatpush1.bf16.msra.mxu0 0
    %156 = vmatprep.subr.bf16.mxu0 0
    %157 = vmatpush1.bf16.msra.mxu0 0
    %158 = vmatprep.subr.bf16.mxu0 0
    %159 = vmatpush1.bf16.msra.mxu0 0
    %160 = vmatprep.subr.bf16.mxu0 0
    %161 = vmatpush1.bf16.msra.mxu0 0
    %162 = vmatprep.subr.bf16.mxu0 0
    %163 = vmatpush1.bf16.msra.mxu0 0
    %164 = vmatprep.subr.bf16.mxu0 0
    %165 = vmatpush1.bf16.msra.mxu0 0
    %166 = vmatprep.subr.bf16.mxu0 0
    %167 = vmatpush1.bf16.msra.mxu0 0
    %168 = vmatprep.mubr.bf16.mxu0 0
    %169 = vmatmul.mubr.bf16.gmra.mrb[0].mxu0 %v134
    %v170 = vpop.f32.mrb[0].mxu0
    %v171 = vadd.f32 %v106, %v170
    %v172 = vpop.f32.mrb[0].mxu0
    %v173 = vpop.f32.mrb[0].mxu0
    %v174 = vpop.f32.mrb[0].mxu0
    %175 = vdwg.mxu0
    %vm176 = vcmask 130048
    %177 = vst.msk [vmem:[#allocation2] sm:$0xff] %vm176, %v171
    // Predicated region
    $region22: #{tpu_custom_call.1} parent=1 // pred_check
      _
    $region23: #{tpu_custom_call.1} parent=1 // pred_check_branch
      %179 = sbr.rel (0) target = $region25
    $region24: #{tpu_custom_call.1} parent=1 // pred_region
      %s181 = ssub.s32 128, 128
      %182 = vsyncadd [#allocation3], %s181
      %s184 = sshll.u32 [#allocation2], 4
      %s185 = int_to_ptr.vmem [resolvable:$true] %s184
      %187 = dma.vmem_to_hbm [thread:$0]  %s185, 128, %s5, [#allocation3]
    $region25: #{tpu_custom_call.1} parent=1 // pred_fallthru
      _
    // Predicated region
    $region26: #{tpu_custom_call.1} parent=1 // pred_check
      _
    $region27: #{tpu_custom_call.1} parent=1 // pred_check_branch
      %189 = sbr.rel (0) target = $region29
    $region28: #{tpu_custom_call.1} parent=1 // pred_region
      %190 = dma.done [#allocation3], 128
    $region29: #{tpu_custom_call.1} parent=1 // pred_fallthru
      _
    %191 = vsyncpa [#allocation3], 1

</llo_original>
